<compile_context>
chip_gen: v7x
topology: tpu7x:2x2x1
jax: 0.10.0
libtpu: 0.0.40
codegen_flags: <defaults>
</compile_context>

<pallas_src>
import functools

import jax
import jax.numpy as jnp
from jax.experimental import pallas as pl
from jax.experimental.pallas import tpu as pltpu

BN_EPS = 1e-5
LANE = 128
H1, H2 = 256, 128
# Conservative whole-batch-resident budget (fits v5e 16 MiB scoped default and leaves
# plenty of headroom on v7x's 64 MiB physical VMEM).
_FUSED_VMEM_BUDGET = 12 * 1024 * 1024


def _round_up(n, m):
    return (n + m - 1) // m * m


def _pad_last(a, width):
    pad = width - a.shape[-1]
    if pad == 0:
        return a
    return jnp.pad(a, [(0, 0)] * (a.ndim - 1) + [(0, pad)])


# ---------------------------------------------------------------------------
# Path 1: whole batch resident in VMEM (small / moderate B) — one fused kernel
# ---------------------------------------------------------------------------
def _bn_relu_fused(h, gamma, beta):
    """Training-mode BatchNorm1d + ReLU folded into a single scale/shift FMA (f32)."""
    mu = jnp.mean(h, axis=0, keepdims=True)
    var = jnp.maximum(jnp.mean(h * h, axis=0, keepdims=True) - mu * mu, 0.0)
    scale = gamma * jax.lax.rsqrt(var + BN_EPS)
    shift = beta - mu * scale
    return jnp.maximum(h * scale + shift, 0.0)


def _fused_kernel(x_ref, w1_ref, w2_ref, w3_ref, b3_ref,
                  g1_ref, be1_ref, g2_ref, be2_ref, o_ref):
    bf16 = jnp.bfloat16
    # fc1 (bias cancelled by BN1) + bn1 + relu
    h = jnp.dot(x_ref[...].astype(bf16), w1_ref[...],
                preferred_element_type=jnp.float32)
    h = _bn_relu_fused(h, g1_ref[...], be1_ref[...])
    # fc2 (bias cancelled by BN2) + bn2 + relu
    h = jnp.dot(h.astype(bf16), w2_ref[...],
                preferred_element_type=jnp.float32)
    h = _bn_relu_fused(h, g2_ref[...], be2_ref[...])
    # fc3 (lane-padded to a multiple of 128 columns) — the only bias kept
    out = jnp.dot(h.astype(bf16), w3_ref[...],
                  preferred_element_type=jnp.float32) + b3_ref[...]
    o_ref[...] = out.astype(o_ref.dtype)


def _forward_fused(x, params):
    (w1, _b1, g1, be1, w2, _b2, g2, be2, w3, b3) = params
    B, d_in = x.shape
    num_classes = w3.shape[1]
    out_pad = _round_up(max(num_classes, LANE), LANE)

    # One-time wrapper-side casts / pads (no per-step VPU cast inside the kernel).
    w1b = w1.astype(jnp.bfloat16)
    w2b = w2.astype(jnp.bfloat16)
    w3b = _pad_last(w3, out_pad).astype(jnp.bfloat16)
    b3p = _pad_last(b3, out_pad)

    flops = 2 * B * (d_in * H1 + H1 * H2 + H2 * out_pad)
    bytes_acc = (4 * (B * d_in + B * out_pad + 2 * H1 + 2 * H2 + out_pad)
                 + 2 * (d_in * H1 + H1 * H2 + H2 * out_pad))
    vmem = pl.BlockSpec(memory_space=pltpu.MemorySpace.VMEM)
    out = pl.pallas_call(
        _fused_kernel,
        out_shape=jax.ShapeDtypeStruct((B, out_pad), jnp.float32),
        in_specs=[vmem] * 9,
        out_specs=vmem,
        cost_estimate=pl.CostEstimate(flops=flops, transcendentals=H1 + H2,
                                      bytes_accessed=bytes_acc),
    )(x, w1b, w2b, w3b, b3p, g1, be1, g2, be2)
    return out[:, :num_classes]


# ---------------------------------------------------------------------------
# Path 2: batch-tiled, recompute-from-x streaming; exact two-phase BatchNorm
# ---------------------------------------------------------------------------
def _stage1_stats_kernel(x_ref, w1_ref, s_ref, ss_ref):
    """Per-tile sum / sum-of-squares of y1 = x @ W1 (bias dropped).

    Zero-padded batch rows contribute exactly 0 to both partials, so no mask needed.
    """
    y = jnp.dot(x_ref[...].astype(jnp.bfloat16), w1_ref[...],
                preferred_element_type=jnp.float32)
    s_ref[...] = jnp.sum(y, axis=0, keepdims=True)[None]
    ss_ref[...] = jnp.sum(y * y, axis=0, keepdims=True)[None]


def _make_stage2_kernel(block_rows, true_b, b_pad):
    needs_mask = (b_pad != true_b)

    def kernel(x_ref, w1_ref, sc1_ref, sh1_ref, w2_ref, s_ref, ss_ref):
        bf16 = jnp.bfloat16
        # Recompute fc1 (K is tiny) instead of reading a materialized y1 from HBM.
        y1 = jnp.dot(x_ref[...].astype(bf16), w1_ref[...],
                     preferred_element_type=jnp.float32)
        h = jnp.maximum(y1 * sc1_ref[...] + sh1_ref[...], 0.0)
        if needs_mask:
            # Padded rows become relu(shift1) != 0 after BN1; zero them so they do
            # not pollute the y2 statistics.
            row = (pl.program_id(0) * block_rows
                   + jax.lax.broadcasted_iota(jnp.int32, (block_rows, 1), 0))
            h = jnp.where(row < true_b, h, 0.0)
        y2 = jnp.dot(h.astype(bf16), w2_ref[...],
                     preferred_element_type=jnp.float32)
        s_ref[...] = jnp.sum(y2, axis=0, keepdims=True)[None]
        ss_ref[...] = jnp.sum(y2 * y2, axis=0, keepdims=True)[None]

    return kernel


def _stage3_kernel(x_ref, w1_ref, sc1_ref, sh1_ref, w2_ref, sc2_ref, sh2_ref,
                   w3_ref, b3_ref, o_ref):
    bf16 = jnp.bfloat16
    y1 = jnp.dot(x_ref[...].astype(bf16), w1_ref[...],
                 preferred_element_type=jnp.float32)
    h = jnp.maximum(y1 * sc1_ref[...] + sh1_ref[...], 0.0)
    y2 = jnp.dot(h.astype(bf16), w2_ref[...],
                 preferred_element_type=jnp.float32)
    h2 = jnp.maximum(y2 * sc2_ref[...] + sh2_ref[...], 0.0)
    out = jnp.dot(h2.astype(bf16), w3_ref[...],
                  preferred_element_type=jnp.float32) + b3_ref[...]
    o_ref[...] = out.astype(o_ref.dtype)


def _finalize_bn(s_part, ss_part, n, gamma, beta):
    """Reduce per-tile partial sums into full-batch BN scale/shift (tiny, pure JAX)."""
    s = jnp.sum(s_part, axis=0)          # (1, N)
    ss = jnp.sum(ss_part, axis=0)        # (1, N)
    mu = s / n
    var = jnp.maximum(ss / n - mu * mu, 0.0)   # biased var (torch train-mode BN), clamped
    scale = gamma * jax.lax.rsqrt(var + BN_EPS)
    shift = beta - mu * scale
    return scale, shift


def _forward_tiled(x, params, block_rows):
    (w1, _b1, g1, be1, w2, _b2, g2, be2, w3, b3) = params
    B, d_in = x.shape
    num_classes = w3.shape[1]
    out_pad = _round_up(max(num_classes, LANE), LANE)

    nt = pl.cdiv(B, block_rows)
    b_pad = nt * block_rows
    if b_pad != B:
        x = jnp.pad(x, ((0, b_pad - B), (0, 0)))

    # One-time weight casts / pads.
    w1b = w1.astype(jnp.bfloat16)
    w2b = w2.astype(jnp.bfloat16)
    w3b = _pad_last(w3, out_pad).astype(jnp.bfloat16)
    b3p = _pad_last(b3, out_pad)

    parallel = pltpu.CompilerParams(dimension_semantics=("parallel",))

    def rows(cols):
        return pl.BlockSpec((block_rows, cols), lambda i: (i, 0))

    def resident(shape):
        return pl.BlockSpec(tuple(shape), lambda i: (0,) * len(shape))

    def stat(cols):
        return pl.BlockSpec((1, 1, cols), lambda i: (i, 0, 0))

    def stat_shape(cols):
        return jax.ShapeDtypeStruct((nt, 1, cols), jnp.float32)

    # ---- stage 1: per-tile sum / sumsq of y1 = x @ W1 (no y1 materialization) ----
    s1, ss1 = pl.pallas_call(
        _stage1_stats_kernel,
        grid=(nt,),
        in_specs=(rows(d_in), resident(w1b.shape)),
        out_specs=(stat(H1), stat(H1)),
        out_shape=(stat_shape(H1), stat_shape(H1)),
        compiler_params=parallel,
        cost_estimate=pl.CostEstimate(
            flops=2 * b_pad * d_in * H1, transcendentals=0,
            bytes_accessed=4 * (b_pad * d_in + 2 * nt * H1) + 2 * d_in * H1),
    )(x, w1b)
    sc1, sh1 = _finalize_bn(s1, ss1, float(B), g1, be1)

    # ---- stage 2: recompute fc1, BN1+ReLU, fc2 -> per-tile sum / sumsq of y2 -----
    s2, ss2 = pl.pallas_call(
        _make_stage2_kernel(block_rows, B, b_pad),
        grid=(nt,),
        in_specs=(rows(d_in), resident(w1b.shape), resident(sc1.shape),
                  resident(sh1.shape), resident(w2b.shape)),
        out_specs=(stat(H2), stat(H2)),
        out_shape=(stat_shape(H2), stat_shape(H2)),
        compiler_params=parallel,
        cost_estimate=pl.CostEstimate(
            flops=2 * b_pad * (d_in * H1 + H1 * H2) + 3 * b_pad * H1,
            transcendentals=0,
            bytes_accessed=(4 * (b_pad * d_in + 2 * H1 + 2 * nt * H2)
                            + 2 * (d_in * H1 + H1 * H2))),
    )(x, w1b, sc1, sh1, w2b)
    sc2, sh2 = _finalize_bn(s2, ss2, float(B), g2, be2)

    # ---- stage 3: recompute fc1..fc2, BN+ReLU, fc3 -> lane-padded output ---------
    out = pl.pallas_call(
        _stage3_kernel,
        grid=(nt,),
        in_specs=(rows(d_in), resident(w1b.shape), resident(sc1.shape),
                  resident(sh1.shape), resident(w2b.shape), resident(sc2.shape),
                  resident(sh2.shape), resident(w3b.shape), resident(b3p.shape)),
        out_specs=rows(out_pad),
        out_shape=jax.ShapeDtypeStruct((b_pad, out_pad), jnp.float32),
        compiler_params=parallel,
        cost_estimate=pl.CostEstimate(
            flops=2 * b_pad * (d_in * H1 + H1 * H2 + H2 * out_pad)
                  + 3 * b_pad * (H1 + H2),
            transcendentals=0,
            bytes_accessed=(4 * (b_pad * d_in + b_pad * out_pad
                                 + 2 * H1 + 2 * H2 + out_pad)
                            + 2 * (d_in * H1 + H1 * H2 + H2 * out_pad))),
    )(x, w1b, sc1, sh1, w2b, sc2, sh2, w3b, b3p)
    # TODO(synk): consumers that accept the lane-padded (B, 128) slab can skip this slice.
    return out[:B, :num_classes]


# ---------------------------------------------------------------------------
# Public forward + init + reference
# ---------------------------------------------------------------------------
def improved_nn_forward(x, params, *, block_rows=1024):
    """ImprovedNN forward (training-mode BatchNorm semantics, exact full-batch stats).

    Small batches that comfortably fit VMEM use one whole-batch fused kernel; everything
    else uses the batch-parallel tiled path (batch padded to a multiple of block_rows,
    padded rows masked out of the BN statistics)."""
    B, d_in = x.shape
    num_classes = params[-1].shape[-1]
    out_pad = _round_up(max(num_classes, LANE), LANE)
    # Rough whole-batch f32 activation footprint (x + h1 + h2 + padded out) for the
    # gridless fused kernel; sized against the smallest scoped-VMEM default (v5e).
    fused_act_bytes = 4 * B * (d_in + H1 + H2 + out_pad)
    if B > block_rows or fused_act_bytes > _FUSED_VMEM_BUDGET:
        br = block_rows
        while br > 8 and B <= br:      # guarantee >= 2 batch tiles for the grid
            br //= 2
        br = max(8, br)
        return _forward_tiled(x, params, br)
    return _forward_fused(x, params)


def init_params(key, input_size, num_classes):
    """Deterministic synthetic init (shapes match the PyTorch module; W stored (in, out))."""
    ks = jax.random.split(key, 6)

    def lin(kw, kb, fan_in, fan_out):
        bound = 1.0 / jnp.sqrt(fan_in)
        w = jax.random.uniform(kw, (fan_in, fan_out), jnp.float32, -bound, bound)
        b = jax.random.uniform(kb, (1, fan_out), jnp.float32, -bound, bound)
        return w, b

    w1, b1 = lin(ks[0], ks[1], input_size, H1)
    w2, b2 = lin(ks[2], ks[3], H1, H2)
    w3, b3 = lin(ks[4], ks[5], H2, num_classes)
    # BatchNorm1d default affine init: gamma=1, beta=0
    g1, be1 = jnp.ones((1, H1), jnp.float32), jnp.zeros((1, H1), jnp.float32)
    g2, be2 = jnp.ones((1, H2), jnp.float32), jnp.zeros((1, H2), jnp.float32)
    return (w1, b1, g1, be1, w2, b2, g2, be2, w3, b3)


def reference_forward(x, params):
    """Pure-JAX f32 reference of the same forward pass (torch train-mode BN semantics).

    Keeps the fc1/fc2 biases to demonstrate the kernels' bias-drop is exact."""
    (w1, b1, g1, be1, w2, b2, g2, be2, w3, b3) = params

    def bn(h, g, be):
        mu = jnp.mean(h, axis=0, keepdims=True)
        var = jnp.mean((h - mu) ** 2, axis=0, keepdims=True)
        return (h - mu) / jnp.sqrt(var + BN_EPS) * g + be

    h = jnp.maximum(bn(x @ w1 + b1, g1, be1), 0.0)
    h = jnp.maximum(bn(h @ w2 + b2, g2, be2), 0.0)
    return h @ w3 + b3


if __name__ == "__main__":
    INPUT_SIZE, NUM_CLASSES = 32, 10
    key = jax.random.PRNGKey(0)
    kx, kp, kx2 = jax.random.split(key, 3)
    params = init_params(kp, INPUT_SIZE, NUM_CLASSES)

    # Small-batch path: one fused kernel, whole batch resident in VMEM.
    x_small = jax.random.normal(kx, (8, INPUT_SIZE), jnp.float32)
    out_small = jax.block_until_ready(improved_nn_forward(x_small, params))
    ref_small = reference_forward(x_small, params)
    assert out_small.shape == (8, NUM_CLASSES)
    # bf16 MXU operands (f32 accumulation) => small deviation vs the pure-f32 reference.
    assert jnp.allclose(out_small, ref_small, atol=1e-1, rtol=1e-1), \
        float(jnp.max(jnp.abs(out_small - ref_small)))

    # Tiled path: batch-parallel grid, recompute-from-x streaming, and a non-multiple
    # batch (600 rows, block_rows=128) to exercise the padded-row stat masking.
    x_big = jax.random.normal(kx2, (600, INPUT_SIZE), jnp.float32)
    out_big = jax.block_until_ready(improved_nn_forward(x_big, params, block_rows=128))
    ref_big = reference_forward(x_big, params)
    assert out_big.shape == (600, NUM_CLASSES)
    assert jnp.allclose(out_big, ref_big, atol=1e-1, rtol=1e-1), \
        float(jnp.max(jnp.abs(out_big - ref_big)))

    print("KERNEL_OK")
</pallas_src>

<mosaic_0001>
module attributes {stable_mosaic.version = 11 : i64} {
  func.func @_fused_kernel(%arg0: memref<8x32xf32, #tpu.memory_space<vmem>>, %arg1: memref<32x256xbf16, #tpu.memory_space<vmem>>, %arg2: memref<256x128xbf16, #tpu.memory_space<vmem>>, %arg3: memref<128x128xbf16, #tpu.memory_space<vmem>>, %arg4: memref<1x128xf32, #tpu.memory_space<vmem>>, %arg5: memref<1x256xf32, #tpu.memory_space<vmem>>, %arg6: memref<1x256xf32, #tpu.memory_space<vmem>>, %arg7: memref<1x128xf32, #tpu.memory_space<vmem>>, %arg8: memref<1x128xf32, #tpu.memory_space<vmem>>, %arg9: memref<8x128xf32, #tpu.memory_space<vmem>>) attributes {dimension_semantics = [], scalar_prefetch = 0 : i64, scratch_operands = 0 : i64, tpu.core_type = #tpu.core_type<tc>} {
    %c0 = arith.constant 0 : index
    %c0_0 = arith.constant 0 : index
    %0 = vector.load %arg0[%c0, %c0_0] : memref<8x32xf32, #tpu.memory_space<vmem>>, vector<8x32xf32>
    %1 = arith.truncf %0 : vector<8x32xf32> to vector<8x32xbf16>
    %c0_1 = arith.constant 0 : index
    %c0_2 = arith.constant 0 : index
    %2 = vector.load %arg1[%c0_1, %c0_2] : memref<32x256xbf16, #tpu.memory_space<vmem>>, vector<32x256xbf16>
    %cst = arith.constant dense<0.000000e+00> : vector<8x256xf32>
    %3 = tpu.matmul %1, %2, %cst {dimension_numbers = #tpu.dot_dimension_numbers<[1], [0], [0], [1], [0, 0, 1, 1], [], []>} : vector<8x32xbf16>, vector<32x256xbf16>, vector<8x256xf32> -> vector<8x256xf32>
    %c0_3 = arith.constant 0 : index
    %c0_4 = arith.constant 0 : index
    %4 = vector.load %arg5[%c0_3, %c0_4] : memref<1x256xf32, #tpu.memory_space<vmem>>, vector<1x256xf32>
    %c0_5 = arith.constant 0 : index
    %c0_6 = arith.constant 0 : index
    %5 = vector.load %arg6[%c0_5, %c0_6] : memref<1x256xf32, #tpu.memory_space<vmem>>, vector<1x256xf32>
    %cst_7 = arith.constant dense<0.000000e+00> : vector<256xf32>
    %6 = vector.multi_reduction <add>, %3, %cst_7 [0] : vector<8x256xf32> to vector<256xf32>
    %7 = vector.shape_cast %6 : vector<256xf32> to vector<1x256xf32>
    %cst_8 = arith.constant 8.000000e+00 : f32
    %8 = vector.broadcast %cst_8 : f32 to vector<1x256xf32>
    %9 = arith.divf %7, %8 : vector<1x256xf32>
    %10 = arith.mulf %3, %3 : vector<8x256xf32>
    %cst_9 = arith.constant dense<0.000000e+00> : vector<256xf32>
    %11 = vector.multi_reduction <add>, %10, %cst_9 [0] : vector<8x256xf32> to vector<256xf32>
    %12 = vector.shape_cast %11 : vector<256xf32> to vector<1x256xf32>
    %cst_10 = arith.constant 8.000000e+00 : f32
    %13 = vector.broadcast %cst_10 : f32 to vector<1x256xf32>
    %14 = arith.divf %12, %13 : vector<1x256xf32>
    %15 = arith.mulf %9, %9 : vector<1x256xf32>
    %16 = arith.subf %14, %15 : vector<1x256xf32>
    %cst_11 = arith.constant 0.000000e+00 : f32
    %17 = vector.broadcast %cst_11 : f32 to vector<1x256xf32>
    %18 = arith.maximumf %16, %17 : vector<1x256xf32>
    %cst_12 = arith.constant 9.99999974E-6 : f32
    %19 = vector.broadcast %cst_12 : f32 to vector<1x256xf32>
    %20 = arith.addf %18, %19 : vector<1x256xf32>
    %21 = math.rsqrt %20 : vector<1x256xf32>
    %22 = arith.mulf %4, %21 : vector<1x256xf32>
    %23 = arith.mulf %9, %22 : vector<1x256xf32>
    %24 = arith.subf %5, %23 : vector<1x256xf32>
    %25 = vector.broadcast %22 : vector<1x256xf32> to vector<8x256xf32>
    %26 = arith.mulf %3, %25 : vector<8x256xf32>
    %27 = vector.broadcast %24 : vector<1x256xf32> to vector<8x256xf32>
    %28 = arith.addf %26, %27 : vector<8x256xf32>
    %cst_13 = arith.constant 0.000000e+00 : f32
    %29 = vector.broadcast %cst_13 : f32 to vector<8x256xf32>
    %30 = arith.maximumf %28, %29 : vector<8x256xf32>
    %31 = arith.truncf %30 : vector<8x256xf32> to vector<8x256xbf16>
    %c0_14 = arith.constant 0 : index
    %c0_15 = arith.constant 0 : index
    %32 = vector.load %arg2[%c0_14, %c0_15] : memref<256x128xbf16, #tpu.memory_space<vmem>>, vector<256x128xbf16>
    %cst_16 = arith.constant dense<0.000000e+00> : vector<8x128xf32>
    %33 = tpu.matmul %31, %32, %cst_16 {dimension_numbers = #tpu.dot_dimension_numbers<[1], [0], [0], [1], [0, 0, 1, 1], [], []>} : vector<8x256xbf16>, vector<256x128xbf16>, vector<8x128xf32> -> vector<8x128xf32>
    %c0_17 = arith.constant 0 : index
    %c0_18 = arith.constant 0 : index
    %34 = vector.load %arg7[%c0_17, %c0_18] : memref<1x128xf32, #tpu.memory_space<vmem>>, vector<1x128xf32>
    %c0_19 = arith.constant 0 : index
    %c0_20 = arith.constant 0 : index
    %35 = vector.load %arg8[%c0_19, %c0_20] : memref<1x128xf32, #tpu.memory_space<vmem>>, vector<1x128xf32>
    %cst_21 = arith.constant dense<0.000000e+00> : vector<128xf32>
    %36 = vector.multi_reduction <add>, %33, %cst_21 [0] : vector<8x128xf32> to vector<128xf32>
    %37 = vector.shape_cast %36 : vector<128xf32> to vector<1x128xf32>
    %cst_22 = arith.constant 8.000000e+00 : f32
    %38 = vector.broadcast %cst_22 : f32 to vector<1x128xf32>
    %39 = arith.divf %37, %38 : vector<1x128xf32>
    %40 = arith.mulf %33, %33 : vector<8x128xf32>
    %cst_23 = arith.constant dense<0.000000e+00> : vector<128xf32>
    %41 = vector.multi_reduction <add>, %40, %cst_23 [0] : vector<8x128xf32> to vector<128xf32>
    %42 = vector.shape_cast %41 : vector<128xf32> to vector<1x128xf32>
    %cst_24 = arith.constant 8.000000e+00 : f32
    %43 = vector.broadcast %cst_24 : f32 to vector<1x128xf32>
    %44 = arith.divf %42, %43 : vector<1x128xf32>
    %45 = arith.mulf %39, %39 : vector<1x128xf32>
    %46 = arith.subf %44, %45 : vector<1x128xf32>
    %cst_25 = arith.constant 0.000000e+00 : f32
    %47 = vector.broadcast %cst_25 : f32 to vector<1x128xf32>
    %48 = arith.maximumf %46, %47 : vector<1x128xf32>
    %cst_26 = arith.constant 9.99999974E-6 : f32
    %49 = vector.broadcast %cst_26 : f32 to vector<1x128xf32>
    %50 = arith.addf %48, %49 : vector<1x128xf32>
    %51 = math.rsqrt %50 : vector<1x128xf32>
    %52 = arith.mulf %34, %51 : vector<1x128xf32>
    %53 = arith.mulf %39, %52 : vector<1x128xf32>
    %54 = arith.subf %35, %53 : vector<1x128xf32>
    %55 = vector.broadcast %52 : vector<1x128xf32> to vector<8x128xf32>
    %56 = arith.mulf %33, %55 : vector<8x128xf32>
    %57 = vector.broadcast %54 : vector<1x128xf32> to vector<8x128xf32>
    %58 = arith.addf %56, %57 : vector<8x128xf32>
    %cst_27 = arith.constant 0.000000e+00 : f32
    %59 = vector.broadcast %cst_27 : f32 to vector<8x128xf32>
    %60 = arith.maximumf %58, %59 : vector<8x128xf32>
    %61 = arith.truncf %60 : vector<8x128xf32> to vector<8x128xbf16>
    %c0_28 = arith.constant 0 : index
    %c0_29 = arith.constant 0 : index
    %62 = vector.load %arg3[%c0_28, %c0_29] : memref<128x128xbf16, #tpu.memory_space<vmem>>, vector<128x128xbf16>
    %cst_30 = arith.constant dense<0.000000e+00> : vector<8x128xf32>
    %63 = tpu.matmul %61, %62, %cst_30 {dimension_numbers = #tpu.dot_dimension_numbers<[1], [0], [0], [1], [0, 0, 1, 1], [], []>} : vector<8x128xbf16>, vector<128x128xbf16>, vector<8x128xf32> -> vector<8x128xf32>
    %c0_31 = arith.constant 0 : index
    %c0_32 = arith.constant 0 : index
    %64 = vector.load %arg4[%c0_31, %c0_32] : memref<1x128xf32, #tpu.memory_space<vmem>>, vector<1x128xf32>
    %65 = vector.broadcast %64 : vector<1x128xf32> to vector<8x128xf32>
    %66 = arith.addf %63, %65 : vector<8x128xf32>
    %c0_33 = arith.constant 0 : index
    %c0_34 = arith.constant 0 : index
    %67 = vector.load %arg9[%c0_33, %c0_34] : memref<8x128xf32, #tpu.memory_space<vmem>>, vector<8x128xf32>
    tpu.vector_store %arg9[%c0_33, %c0_34], %66 {strides = array<i32>} : memref<8x128xf32, #tpu.memory_space<vmem>>, vector<8x128xf32>,
    return
  }
}

</mosaic_0001>

<llo_original>
// kernel: tpu_custom_call.1
$region0: #{tpu_custom_call.1}
  #allocation0 [shape = 'u32[]', space=smem, size = 0x4, offset = 0x4, fixed_abs, tag = 'smem constant byte address 0x4 - core index']
  #allocation1 [shape = 'u32[144,128]{1,0:T(1,128)}', space=vmem, size = 0x12000, scoped, tag = 'internal scratch']
  %s0 = inlined_call_operand.hbm [shape: f32[8,32], index: 0, kind: input, shape index: {}]
  %s1 = inlined_call_operand.hbm [shape: bf16[32,256], index: 1, kind: input, shape index: {}]
  %s2 = inlined_call_operand.hbm [shape: bf16[256,128], index: 2, kind: input, shape index: {}]
  %s3 = inlined_call_operand.hbm [shape: bf16[128,128], index: 3, kind: input, shape index: {}]
  %s4 = inlined_call_operand.vmem [shape: f32[1,128], index: 4, kind: input, shape index: {}]
  %s5 = inlined_call_operand.vmem [shape: f32[1,256], index: 5, kind: input, shape index: {}]
  %s6 = inlined_call_operand.vmem [shape: f32[1,256], index: 6, kind: input, shape index: {}]
  %s7 = inlined_call_operand.vmem [shape: f32[1,128], index: 7, kind: input, shape index: {}]
  %s8 = inlined_call_operand.vmem [shape: f32[1,128], index: 8, kind: input, shape index: {}]
  %s9 = inlined_call_operand.hbm [shape: f32[8,128], index: 9, kind: output, shape index: {}]
  %s10 = sld [smem:[#allocation0]]
  $region62: #{tpu_custom_call.1} parent=0
    _
  %s12 = ssub.s32 1, %s10
  %s13 = scalar_select 0, %s12, %s10
  $region1: #{tpu_custom_call.1} parent=0
    #allocation2 [shape = 'u8[4096]{0}', space=vmem, size = 0x1000, scoped, tag = 'input window, operand 0, single buffered']
    #allocation3 [shape = 's32[1]{0}', space=sflag, size = 0x4, scoped, tag = 'scoped memory for tpu_custom_call.1']
    #allocation4 [shape = 's32[1]{0}', space=sflag, size = 0x4, scoped, tag = 'scoped memory for tpu_custom_call.1']
    #allocation5 [shape = 'u8[16384]{0}', space=vmem, size = 0x4000, scoped, tag = 'input window, operand 1, single buffered']
    #allocation6 [shape = 's32[1]{0}', space=sflag, size = 0x4, scoped, tag = 'scoped memory for tpu_custom_call.1']
    #allocation7 [shape = 'u8[65536]{0}', space=vmem, size = 0x10000, scoped, tag = 'input window, operand 2, single buffered']
    #allocation8 [shape = 'u8[32768]{0}', space=vmem, size = 0x8000, scoped, tag = 'input window, operand 3, single buffered']
    #allocation9 [shape = 's32[1]{0}', space=sflag, size = 0x4, scoped, tag = 'scoped memory for tpu_custom_call.1']
    #allocation10 [shape = 'u8[4096]{0}', space=vmem, size = 0x1000, scoped, tag = 'output window, operand 0, single buffered']
    %14 = vsyncpa [#allocation3], 0
    %15 = vsyncpa [#allocation6], 0
    %16 = vsyncpa [#allocation9], 0
    %17 = vsyncpa [#allocation4], 0
    // Predicated region
    $region2: #{tpu_custom_call.1} parent=1 // pred_check
      _
    $region3: #{tpu_custom_call.1} parent=1 // pred_check_branch
      %19 = sbr.rel (0) target = $region5
    $region4: #{tpu_custom_call.1} parent=1 // pred_region
      %s21 = ssub.s32 128, 128
      %22 = vsyncadd [#allocation3], %s21
      %s24 = sshll.u32 [#allocation2], 4
      %s25 = int_to_ptr.vmem [resolvable:$true] %s24
      %27 = dma.hbm_to_vmem [thread:$0]  %s0, 128, %s25, [#allocation3]
    $region5: #{tpu_custom_call.1} parent=1 // pred_fallthru
      _
    // Predicated region
    $region6: #{tpu_custom_call.1} parent=1 // pred_check
      _
    $region7: #{tpu_custom_call.1} parent=1 // pred_check_branch
      %29 = sbr.rel (0) target = $region9
    $region8: #{tpu_custom_call.1} parent=1 // pred_region
      %s31 = ssub.s32 512, 512
      %32 = vsyncadd [#allocation6], %s31
      %s33 = sshll.u32 [#allocation5], 4
      %s34 = int_to_ptr.vmem [resolvable:$true] %s33
      %39 = dma.hbm_to_vmem [thread:$0]  %s1, 512, %s34, [#allocation6], 128, 128, 8
    $region9: #{tpu_custom_call.1} parent=1 // pred_fallthru
      _
    // Predicated region
    $region10: #{tpu_custom_call.1} parent=1 // pred_check
      _
    $region11: #{tpu_custom_call.1} parent=1 // pred_check_branch
      %41 = sbr.rel (0) target = $region13
    $region12: #{tpu_custom_call.1} parent=1 // pred_region
      %s43 = ssub.s32 2048, 2048
      %44 = vsyncadd [#allocation6], %s43
      %s45 = sshll.u32 [#allocation7], 4
      %s46 = int_to_ptr.vmem [resolvable:$true] %s45
      %51 = dma.hbm_to_vmem [thread:$0]  %s2, 2048, %s46, [#allocation6], 64, 64, 4
    $region13: #{tpu_custom_call.1} parent=1 // pred_fallthru
      _
    // Predicated region
    $region14: #{tpu_custom_call.1} parent=1 // pred_check
      _
    $region15: #{tpu_custom_call.1} parent=1 // pred_check_branch
      %53 = sbr.rel (0) target = $region17
    $region16: #{tpu_custom_call.1} parent=1 // pred_region
      %s55 = ssub.s32 1024, 1024
      %56 = vsyncadd [#allocation9], %s55
      %s57 = sshll.u32 [#allocation8], 4
      %s58 = int_to_ptr.vmem [resolvable:$true] %s57
      %63 = dma.hbm_to_vmem [thread:$0]  %s3, 1024, %s58, [#allocation9], 64, 64, 4
    $region17: #{tpu_custom_call.1} parent=1 // pred_fallthru
      _
    // Predicated region
    $region18: #{tpu_custom_call.1} parent=1 // pred_check
      _
    $region19: #{tpu_custom_call.1} parent=1 // pred_check_branch
      %65 = sbr.rel (0) target = $region21
    $region20: #{tpu_custom_call.1} parent=1 // pred_region
      _
    $region21: #{tpu_custom_call.1} parent=1 // pred_fallthru
      _
    // Predicated region
    $region22: #{tpu_custom_call.1} parent=1 // pred_check
      _
    $region23: #{tpu_custom_call.1} parent=1 // pred_check_branch
      %67 = sbr.rel (0) target = $region25
    $region24: #{tpu_custom_call.1} parent=1 // pred_region
      _
    $region25: #{tpu_custom_call.1} parent=1 // pred_fallthru
      _
    // Predicated region
    $region26: #{tpu_custom_call.1} parent=1 // pred_check
      _
    $region27: #{tpu_custom_call.1} parent=1 // pred_check_branch
      %69 = sbr.rel (0) target = $region29
    $region28: #{tpu_custom_call.1} parent=1 // pred_region
      _
    $region29: #{tpu_custom_call.1} parent=1 // pred_fallthru
      _
    // Predicated region
    $region30: #{tpu_custom_call.1} parent=1 // pred_check
      _
    $region31: #{tpu_custom_call.1} parent=1 // pred_check_branch
      %71 = sbr.rel (0) target = $region33
    $region32: #{tpu_custom_call.1} parent=1 // pred_region
      _
    $region33: #{tpu_custom_call.1} parent=1 // pred_fallthru
      _
    // Predicated region
    $region34: #{tpu_custom_call.1} parent=1 // pred_check
      _
    $region35: #{tpu_custom_call.1} parent=1 // pred_check_branch
      %73 = sbr.rel (0) target = $region37
    $region36: #{tpu_custom_call.1} parent=1 // pred_region
      _
    $region37: #{tpu_custom_call.1} parent=1 // pred_fallthru
      _
    // Predicated region
    $region38: #{tpu_custom_call.1} parent=1 // pred_check
      _
    $region39: #{tpu_custom_call.1} parent=1 // pred_check_branch
      %75 = sbr.rel (0) target = $region41
    $region40: #{tpu_custom_call.1} parent=1 // pred_region
      %76 = dma.done [#allocation3], 128
    $region41: #{tpu_custom_call.1} parent=1 // pred_fallthru
      _
    // Predicated region
    $region42: #{tpu_custom_call.1} parent=1 // pred_check
      _
    $region43: #{tpu_custom_call.1} parent=1 // pred_check_branch
      %78 = sbr.rel (0) target = $region45
    $region44: #{tpu_custom_call.1} parent=1 // pred_region
      %79 = dma.done [#allocation6], 512
    $region45: #{tpu_custom_call.1} parent=1 // pred_fallthru
      _
    // Predicated region
    $region46: #{tpu_custom_call.1} parent=1 // pred_check
      _
    $region47: #{tpu_custom_call.1} parent=1 // pred_check_branch
      %81 = sbr.rel (0) target = $region49
    $region48: #{tpu_custom_call.1} parent=1 // pred_region
      %82 = dma.done [#allocation6], 2048
    $region49: #{tpu_custom_call.1} parent=1 // pred_fallthru
      _
    // Predicated region
    $region50: #{tpu_custom_call.1} parent=1 // pred_check
      _
    $region51: #{tpu_custom_call.1} parent=1 // pred_check_branch
      %84 = sbr.rel (0) target = $region53
    $region52: #{tpu_custom_call.1} parent=1 // pred_region
      %85 = dma.done [#allocation9], 1024
    $region53: #{tpu_custom_call.1} parent=1 // pred_fallthru
      _
    %v87 = vld [vmem:[#allocation2] sm:$0xff]
    %v88 = vpack.c.bf16 %v87, %v87
    %v89 = vld [vmem:[#allocation5] sm:$0xff]
    %v90 = vld [vmem:[#allocation5 + $0x8] sm:$0xff]
    %v91 = vld [vmem:[#allocation5 + $0x10] sm:$0xff]
    %v92 = vld [vmem:[#allocation5 + $0x18] sm:$0xff]
    %v97 = vunpack.c.l.b16 %v89
    %v98 = vunpack.c.h.b16 %v89
    %v99 = vunpack.c.l.b16 %v90
    %v100 = vunpack.c.h.b16 %v90
    %v101 = vunpack.c.l.b16 %v91
    %v102 = vunpack.c.h.b16 %v91
    %v103 = vunpack.c.l.b16 %v92
    %v104 = vunpack.c.h.b16 %v92
    %v105 = vpack.c.b16 %v99, %v97
    %v106 = vpack.c.b16 %v100, %v98
    %v107 = vpack.c.b16 %v103, %v101
    %v108 = vpack.c.b16 %v104, %v102
    %vm113 = vcmask 261120
    %v115 = vsel %vm113, %v88, 0
    %117 = vmatprep.subr.bf16.mxu0 %v106
    %118 = vmatpush1.bf16.msra.mxu0 %v105
    %119 = vmatprep.subr.bf16.mxu0 %v108
    %120 = vmatpush1.bf16.msra.mxu0 %v107
    %121 = vmatprep.subr.bf16.mxu0 0
    %122 = vmatpush1.bf16.msra.mxu0 0
    %123 = vmatprep.subr.bf16.mxu0 0
    %124 = vmatpush1.bf16.msra.mxu0 0
    %125 = vmatprep.subr.bf16.mxu0 0
    %126 = vmatpush1.bf16.msra.mxu0 0
    %127 = vmatprep.subr.bf16.mxu0 0
    %128 = vmatpush1.bf16.msra.mxu0 0
    %129 = vmatprep.subr.bf16.mxu0 0
    %130 = vmatpush1.bf16.msra.mxu0 0
    %131 = vmatprep.subr.bf16.mxu0 0
    %132 = vmatpush1.bf16.msra.mxu0 0
    %133 = vmatprep.subr.bf16.mxu0 0
    %134 = vmatpush1.bf16.msra.mxu0 0
    %135 = vmatprep.subr.bf16.mxu0 0
    %136 = vmatpush1.bf16.msra.mxu0 0
    %137 = vmatprep.subr.bf16.mxu0 0
    %138 = vmatpush1.bf16.msra.mxu0 0
    %139 = vmatprep.subr.bf16.mxu0 0
    %140 = vmatpush1.bf16.msra.mxu0 0
    %141 = vmatprep.subr.bf16.mxu0 0
    %142 = vmatpush1.bf16.msra.mxu0 0
    %143 = vmatprep.subr.bf16.mxu0 0
    %144 = vmatpush1.bf16.msra.mxu0 0
    %145 = vmatprep.subr.bf16.mxu0 0
    %146 = vmatpush1.bf16.msra.mxu0 0
    %147 = vmatprep.subr.bf16.mxu0 0
    %148 = vmatpush1.bf16.msra.mxu0 0
    %149 = vmatprep.mubr.bf16.mxu0 0
    %150 = vmatmul.mubr.bf16.gmra.mrb[0].mxu0 %v115
    %v151 = vpop.f32.mrb[0].mxu0
    %v152 = vadd.f32 0.0, %v151
    %v153 = vpop.f32.mrb[0].mxu0
    %v154 = vadd.f32 0.0, %v153
    %v155 = vpop.f32.mrb[0].mxu0
    %v156 = vpop.f32.mrb[0].mxu0
    %157 = vdwg.mxu0
    %v158 = vld [vmem:[%s5] sm:$0x3]
    %v159 = vld [vmem:[%s6] sm:$0x3]
    %v160 = vrot.slane %v152, 4
    %v161 = vadd.f32 %v152, %v160
    %v162 = vrot.slane %v161, 2
    %v163 = vadd.f32 %v161, %v162
    %v164 = vrot.slane %v163, 1
    %v165 = vadd.f32 %v163, %v164
    %v166 = vrot.slane %v154, 4
    %v167 = vadd.f32 %v154, %v166
    %v168 = vrot.slane %v167, 2
    %v169 = vadd.f32 %v167, %v168
    %v170 = vrot.slane %v169, 1
    %v171 = vadd.f32 %v169, %v170
    %v172 = vrcp.pop 8.0
    %v173 = vmul.f32 %v165, %v172
    %v174 = vmul.f32 %v171, %v172
    %v175 = vmul.f32 %v152, %v152
    %v176 = vmul.f32 %v154, %v154
    %v177 = vrot.slane %v175, 4
    %v178 = vadd.f32 %v175, %v177
    %v179 = vrot.slane %v178, 2
    %v180 = vadd.f32 %v178, %v179
    %v181 = vrot.slane %v180, 1
    %v182 = vadd.f32 %v180, %v181
    %v183 = vrot.slane %v176, 4
    %v184 = vadd.f32 %v176, %v183
    %v185 = vrot.slane %v184, 2
    %v186 = vadd.f32 %v184, %v185
    %v187 = vrot.slane %v186, 1
    %v188 = vadd.f32 %v186, %v187
    %v189 = vmul.f32 %v182, %v172
    %v190 = vmul.f32 %v188, %v172
    %v191 = vmul.f32 %v173, %v173
    %v192 = vmul.f32 %v174, %v174
    %v193 = vsub.f32 %v189, %v191
    %v194 = vsub.f32 %v190, %v192
    %v195 = vmax.f32 %v193, 0.0
    %v196 = vmax.f32 %v194, 0.0
    %v197 = vadd.f32 %v195, 1e-05
    %v198 = vadd.f32 %v196, 1e-05
    %v199 = vrsqrt.pop %v197
    %v200 = vrsqrt.pop %v198
    %v203 = vcombine.low %v199, %v200
    %v205 = vunpack.c.l.s4 1966171168
    %v206 = vunpack.c.0.s8 %v205
    %v207 = vlaneseq
    %v208 = vshrl.u32 %v207, 7
    %v209 = vsub.s32 %v206, %v208
    %v210 = vrot.slane %v203, %v209
    %v212 = vunpack.c.l.s4 1966171168
    %v213 = vunpack.c.0.s8 %v212
    %v214 = vlaneseq
    %v215 = vshrl.u32 %v214, 7
    %v216 = vsub.s32 %v213, %v215
    %v217 = vrot.slane %v210, %v216
    %v219 = vmul.f32 %v158, %v217
    %v221 = vlaneseq
    %v222 = vshrl.u32 %v221, 7
    %v223 = vsub.s32 0, %v222
    %v224 = vrot.slane %v219, %v223
    %v225 = vlaneseq
    %v226 = vshrl.u32 %v225, 7
    %v227 = vsub.s32 1, %v226
    %v228 = vrot.slane %v219, %v227
    %v231 = vmul.f32 %v173, %v224
    %v232 = vmul.f32 %v174, %v228
    %v235 = vcombine.low %v231, %v232
    %v237 = vunpack.c.l.s4 1966171168
    %v238 = vunpack.c.0.s8 %v237
    %v239 = vlaneseq
    %v240 = vshrl.u32 %v239, 7
    %v241 = vsub.s32 %v238, %v240
    %v242 = vrot.slane %v235, %v241
    %v244 = vunpack.c.l.s4 1966171168
    %v245 = vunpack.c.0.s8 %v244
    %v246 = vlaneseq
    %v247 = vshrl.u32 %v246, 7
    %v248 = vsub.s32 %v245, %v247
    %v249 = vrot.slane %v242, %v248
    %v251 = vsub.f32 %v159, %v249
    %v252 = vmul.f32 %v152, %v224
    %v253 = vmul.f32 %v154, %v228
    %v255 = vlaneseq
    %v256 = vshrl.u32 %v255, 7
    %v257 = vsub.s32 0, %v256
    %v258 = vrot.slane %v251, %v257
    %v259 = vlaneseq
    %v260 = vshrl.u32 %v259, 7
    %v261 = vsub.s32 1, %v260
    %v262 = vrot.slane %v251, %v261
    %v265 = vadd.f32 %v252, %v258
    %v266 = vadd.f32 %v253, %v262
    %v267 = vmax.f32 %v265, 0.0
    %v268 = vmax.f32 %v266, 0.0
    %v269 = vpack.c.bf16 %v267, %v267
    %v270 = vpack.c.bf16 %v268, %v268
    %v271 = vld [vmem:[#allocation7] sm:$0xf]
    %v272 = vld [vmem:[#allocation7 + $0x4] sm:$0xf]
    %v273 = vld [vmem:[#allocation7 + $0x8] sm:$0xf]
    %v274 = vld [vmem:[#allocation7 + $0xc] sm:$0xf]
    %v275 = vld [vmem:[#allocation7 + $0x10] sm:$0xf]
    %v276 = vld [vmem:[#allocation7 + $0x14] sm:$0xf]
    %v277 = vld [vmem:[#allocation7 + $0x18] sm:$0xf]
    %v278 = vld [vmem:[#allocation7 + $0x1c] sm:$0xf]
    %v279 = vld [vmem:[#allocation7 + $0x20] sm:$0xf]
    %v280 = vld [vmem:[#allocation7 + $0x24] sm:$0xf]
    %v281 = vld [vmem:[#allocation7 + $0x28] sm:$0xf]
    %v282 = vld [vmem:[#allocation7 + $0x2c] sm:$0xf]
    %v283 = vld [vmem:[#allocation7 + $0x30] sm:$0xf]
    %v284 = vld [vmem:[#allocation7 + $0x34] sm:$0xf]
    %v285 = vld [vmem:[#allocation7 + $0x38] sm:$0xf]
    %v286 = vld [vmem:[#allocation7 + $0x3c] sm:$0xf]
    %v287 = vld [vmem:[#allocation7 + $0x40] sm:$0xf]
    %v288 = vld [vmem:[#allocation7 + $0x44] sm:$0xf]
    %v289 = vld [vmem:[#allocation7 + $0x48] sm:$0xf]
    %v290 = vld [vmem:[#allocation7 + $0x4c] sm:$0xf]
    %v291 = vld [vmem:[#allocation7 + $0x50] sm:$0xf]
    %v292 = vld [vmem:[#allocation7 + $0x54] sm:$0xf]
    %v293 = vld [vmem:[#allocation7 + $0x58] sm:$0xf]
    %v294 = vld [vmem:[#allocation7 + $0x5c] sm:$0xf]
    %v295 = vld [vmem:[#allocation7 + $0x60] sm:$0xf]
    %v296 = vld [vmem:[#allocation7 + $0x64] sm:$0xf]
    %v297 = vld [vmem:[#allocation7 + $0x68] sm:$0xf]
    %v298 = vld [vmem:[#allocation7 + $0x6c] sm:$0xf]
    %v299 = vld [vmem:[#allocation7 + $0x70] sm:$0xf]
    %v300 = vld [vmem:[#allocation7 + $0x74] sm:$0xf]
    %v301 = vld [vmem:[#allocation7 + $0x78] sm:$0xf]
    %v302 = vld [vmem:[#allocation7 + $0x7c] sm:$0xf]
    %v335 = vunpack.c.l.b16 %v271
    %v336 = vunpack.c.l.b16 %v272
    %v337 = vunpack.c.l.b16 %v273
    %v338 = vunpack.c.l.b16 %v274
    %v339 = vunpack.c.l.b16 %v275
    %v340 = vunpack.c.l.b16 %v276
    %v341 = vunpack.c.l.b16 %v277
    %v342 = vunpack.c.l.b16 %v278
    %v343 = vunpack.c.l.b16 %v279
    %v344 = vunpack.c.l.b16 %v280
    %v345 = vunpack.c.l.b16 %v281
    %v346 = vunpack.c.l.b16 %v282
    %v347 = vunpack.c.l.b16 %v283
    %v348 = vunpack.c.l.b16 %v284
    %v349 = vunpack.c.l.b16 %v285
    %v350 = vunpack.c.l.b16 %v286
    %v351 = vunpack.c.l.b16 %v287
    %v352 = vunpack.c.l.b16 %v288
    %v353 = vunpack.c.l.b16 %v289
    %v354 = vunpack.c.l.b16 %v290
    %v355 = vunpack.c.l.b16 %v291
    %v356 = vunpack.c.l.b16 %v292
    %v357 = vunpack.c.l.b16 %v293
    %v358 = vunpack.c.l.b16 %v294
    %v359 = vunpack.c.l.b16 %v295
    %v360 = vunpack.c.l.b16 %v296
    %v361 = vunpack.c.l.b16 %v297
    %v362 = vunpack.c.l.b16 %v298
    %v363 = vunpack.c.l.b16 %v299
    %v364 = vunpack.c.l.b16 %v300
    %v365 = vunpack.c.l.b16 %v301
    %v366 = vunpack.c.l.b16 %v302
    %v367 = vpack.c.b16 %v336, %v335
    %v368 = vpack.c.b16 %v338, %v337
    %v369 = vpack.c.b16 %v340, %v339
    %v370 = vpack.c.b16 %v342, %v341
    %v371 = vpack.c.b16 %v344, %v343
    %v372 = vpack.c.b16 %v346, %v345
    %v373 = vpack.c.b16 %v348, %v347
    %v374 = vpack.c.b16 %v350, %v349
    %v375 = vpack.c.b16 %v352, %v351
    %v376 = vpack.c.b16 %v354, %v353
    %v377 = vpack.c.b16 %v356, %v355
    %v378 = vpack.c.b16 %v358, %v357
    %v379 = vpack.c.b16 %v360, %v359
    %v380 = vpack.c.b16 %v362, %v361
    %v381 = vpack.c.b16 %v364, %v363
    %v382 = vpack.c.b16 %v366, %v365
    %399 = vmatprep.subr.bf16.mxu0 0
    %400 = vmatpush1.bf16.msra.mxu0 %v367
    %401 = vmatprep.subr.bf16.mxu0 0
    %402 = vmatpush1.bf16.msra.mxu0 %v368
    %403 = vmatprep.subr.bf16.mxu0 0
    %404 = vmatpush1.bf16.msra.mxu0 %v369
    %405 = vmatprep.subr.bf16.mxu0 0
    %406 = vmatpush1.bf16.msra.mxu0 %v370
    %407 = vmatprep.subr.bf16.mxu0 0
    %408 = vmatpush1.bf16.msra.mxu0 %v371
    %409 = vmatprep.subr.bf16.mxu0 0
    %410 = vmatpush1.bf16.msra.mxu0 %v372
    %411 = vmatprep.subr.bf16.mxu0 0
    %412 = vmatpush1.bf16.msra.mxu0 %v373
    %413 = vmatprep.subr.bf16.mxu0 0
    %414 = vmatpush1.bf16.msra.mxu0 %v374
    %415 = vmatprep.subr.bf16.mxu0 0
    %416 = vmatpush1.bf16.msra.mxu0 %v375
    %417 = vmatprep.subr.bf16.mxu0 0
    %418 = vmatpush1.bf16.msra.mxu0 %v376
    %419 = vmatprep.subr.bf16.mxu0 0
    %420 = vmatpush1.bf16.msra.mxu0 %v377
    %421 = vmatprep.subr.bf16.mxu0 0
    %422 = vmatpush1.bf16.msra.mxu0 %v378
    %423 = vmatprep.subr.bf16.mxu0 0
    %424 = vmatpush1.bf16.msra.mxu0 %v379
    %425 = vmatprep.subr.bf16.mxu0 0
    %426 = vmatpush1.bf16.msra.mxu0 %v380
    %427 = vmatprep.subr.bf16.mxu0 0
    %428 = vmatpush1.bf16.msra.mxu0 %v381
    %429 = vmatprep.subr.bf16.mxu0 0
    %430 = vmatpush1.bf16.msra.mxu0 %v382
    %431 = vmatprep.mubr.bf16.mxu0 %v270
    %432 = vmatmul.mubr.bf16.gmra.mrb[0].mxu0 %v269
    %v433 = vpop.f32.mrb[0].mxu0
    %v434 = vadd.f32 0.0, %v433
    %v435 = vpop.f32.mrb[0].mxu0
    %v436 = vpop.f32.mrb[0].mxu0
    %v437 = vpop.f32.mrb[0].mxu0
    %438 = vdwg.mxu0
    %v439 = vld [vmem:[%s7] sm:$0x1]
    %v440 = vld [vmem:[%s8] sm:$0x1]
    %v441 = vrot.slane %v434, 4
    %v442 = vadd.f32 %v434, %v441
    %v443 = vrot.slane %v442, 2
    %v444 = vadd.f32 %v442, %v443
    %v445 = vrot.slane %v444, 1
    %v446 = vadd.f32 %v444, %v445
    %v447 = vmul.f32 %v446, %v172
    %v448 = vmul.f32 %v434, %v434
    %v449 = vrot.slane %v448, 4
    %v450 = vadd.f32 %v448, %v449
    %v451 = vrot.slane %v450, 2
    %v452 = vadd.f32 %v450, %v451
    %v453 = vrot.slane %v452, 1
    %v454 = vadd.f32 %v452, %v453
    %v455 = vmul.f32 %v454, %v172
    %v456 = vmul.f32 %v447, %v447
    %v457 = vsub.f32 %v455, %v456
    %v458 = vmax.f32 %v457, 0.0
    %v459 = vadd.f32 %v458, 1e-05
    %v460 = vrsqrt.pop %v459
    %v461 = vmul.f32 %v439, %v460
    %v462 = vmul.f32 %v447, %v461
    %v463 = vsub.f32 %v440, %v462
    %v465 = vlaneseq
    %v466 = vshrl.u32 %v465, 7
    %v467 = vsub.s32 0, %v466
    %v468 = vrot.slane %v461, %v467
    %v470 = vmul.f32 %v434, %v468
    %v472 = vlaneseq
    %v473 = vshrl.u32 %v472, 7
    %v474 = vsub.s32 0, %v473
    %v475 = vrot.slane %v463, %v474
    %v477 = vadd.f32 %v470, %v475
    %v478 = vmax.f32 %v477, 0.0
    %v479 = vpack.c.bf16 %v478, %v478
    %v480 = vld [vmem:[#allocation8] sm:$0xf]
    %v481 = vld [vmem:[#allocation8 + $0x4] sm:$0xf]
    %v482 = vld [vmem:[#allocation8 + $0x8] sm:$0xf]
    %v483 = vld [vmem:[#allocation8 + $0xc] sm:$0xf]
    %v484 = vld [vmem:[#allocation8 + $0x10] sm:$0xf]
    %v485 = vld [vmem:[#allocation8 + $0x14] sm:$0xf]
    %v486 = vld [vmem:[#allocation8 + $0x18] sm:$0xf]
    %v487 = vld [vmem:[#allocation8 + $0x1c] sm:$0xf]
    %v488 = vld [vmem:[#allocation8 + $0x20] sm:$0xf]
    %v489 = vld [vmem:[#allocation8 + $0x24] sm:$0xf]
    %v490 = vld [vmem:[#allocation8 + $0x28] sm:$0xf]
    %v491 = vld [vmem:[#allocation8 + $0x2c] sm:$0xf]
    %v492 = vld [vmem:[#allocation8 + $0x30] sm:$0xf]
    %v493 = vld [vmem:[#allocation8 + $0x34] sm:$0xf]
    %v494 = vld [vmem:[#allocation8 + $0x38] sm:$0xf]
    %v495 = vld [vmem:[#allocation8 + $0x3c] sm:$0xf]
    %v496 = vld [vmem:[%s4] sm:$0x1]
    %v498 = vlaneseq
    %v499 = vshrl.u32 %v498, 7
    %v500 = vsub.s32 0, %v499
    %v501 = vrot.slane %v496, %v500
    %v519 = vunpack.c.l.b16 %v480
    %v520 = vunpack.c.l.b16 %v481
    %v521 = vunpack.c.l.b16 %v482
    %v522 = vunpack.c.l.b16 %v483
    %v523 = vunpack.c.l.b16 %v484
    %v524 = vunpack.c.l.b16 %v485
    %v525 = vunpack.c.l.b16 %v486
    %v526 = vunpack.c.l.b16 %v487
    %v527 = vunpack.c.l.b16 %v488
    %v528 = vunpack.c.l.b16 %v489
    %v529 = vunpack.c.l.b16 %v490
    %v530 = vunpack.c.l.b16 %v491
    %v531 = vunpack.c.l.b16 %v492
    %v532 = vunpack.c.l.b16 %v493
    %v533 = vunpack.c.l.b16 %v494
    %v534 = vunpack.c.l.b16 %v495
    %v535 = vpack.c.b16 %v520, %v519
    %v536 = vpack.c.b16 %v522, %v521
    %v537 = vpack.c.b16 %v524, %v523
    %v538 = vpack.c.b16 %v526, %v525
    %v539 = vpack.c.b16 %v528, %v527
    %v540 = vpack.c.b16 %v530, %v529
    %v541 = vpack.c.b16 %v532, %v531
    %v542 = vpack.c.b16 %v534, %v533
    %551 = vmatprep.subr.bf16.mxu0 0
    %552 = vmatpush1.bf16.msra.mxu0 %v535
    %553 = vmatprep.subr.bf16.mxu0 0
    %554 = vmatpush1.bf16.msra.mxu0 %v536
    %555 = vmatprep.subr.bf16.mxu0 0
    %556 = vmatpush1.bf16.msra.mxu0 %v537
    %557 = vmatprep.subr.bf16.mxu0 0
    %558 = vmatpush1.bf16.msra.mxu0 %v538
    %559 = vmatprep.subr.bf16.mxu0 0
    %560 = vmatpush1.bf16.msra.mxu0 %v539
    %561 = vmatprep.subr.bf16.mxu0 0
    %562 = vmatpush1.bf16.msra.mxu0 %v540
    %563 = vmatprep.subr.bf16.mxu0 0
    %564 = vmatpush1.bf16.msra.mxu0 %v541
    %565 = vmatprep.subr.bf16.mxu0 0
    %566 = vmatpush1.bf16.msra.mxu0 %v542
    %567 = vmatprep.subr.bf16.mxu0 0
    %568 = vmatpush1.bf16.msra.mxu0 0
    %569 = vmatprep.subr.bf16.mxu0 0
    %570 = vmatpush1.bf16.msra.mxu0 0
    %571 = vmatprep.subr.bf16.mxu0 0
    %572 = vmatpush1.bf16.msra.mxu0 0
    %573 = vmatprep.subr.bf16.mxu0 0
    %574 = vmatpush1.bf16.msra.mxu0 0
    %575 = vmatprep.subr.bf16.mxu0 0
    %576 = vmatpush1.bf16.msra.mxu0 0
    %577 = vmatprep.subr.bf16.mxu0 0
    %578 = vmatpush1.bf16.msra.mxu0 0
    %579 = vmatprep.subr.bf16.mxu0 0
    %580 = vmatpush1.bf16.msra.mxu0 0
    %581 = vmatprep.subr.bf16.mxu0 0
    %582 = vmatpush1.bf16.msra.mxu0 0
    %583 = vmatprep.mubr.bf16.mxu0 0
    %584 = vmatmul.mubr.bf16.gmra.mrb[0].mxu0 %v479
    %v585 = vpop.f32.mrb[0].mxu0
    %v586 = vadd.f32 %v501, %v585
    %v587 = vpop.f32.mrb[0].mxu0
    %v588 = vpop.f32.mrb[0].mxu0
    %v589 = vpop.f32.mrb[0].mxu0
    %590 = vdwg.mxu0
    %591 = vst [vmem:[#allocation10] sm:$0xff] %v586
    // Predicated region
    $region54: #{tpu_custom_call.1} parent=1 // pred_check
      _
    $region55: #{tpu_custom_call.1} parent=1 // pred_check_branch
      %593 = sbr.rel (0) target = $region57
    $region56: #{tpu_custom_call.1} parent=1 // pred_region
      %s595 = ssub.s32 128, 128
      %596 = vsyncadd [#allocation4], %s595
      %s598 = sshll.u32 [#allocation10], 4
      %s599 = int_to_ptr.vmem [resolvable:$true] %s598
      %601 = dma.vmem_to_hbm [thread:$0]  %s599, 128, %s9, [#allocation4]
    $region57: #{tpu_custom_call.1} parent=1 // pred_fallthru
      _
    // Predicated region
    $region58: #{tpu_custom_call.1} parent=1 // pred_check
      _
    $region59: #{tpu_custom_call.1} parent=1 // pred_check_branch
      %603 = sbr.rel (0) target = $region61
    $region60: #{tpu_custom_call.1} parent=1 // pred_region
      %604 = dma.done [#allocation4], 128
    $region61: #{tpu_custom_call.1} parent=1 // pred_fallthru
      _
    %605 = vsyncpa [#allocation3], 1
    %606 = vsyncpa [#allocation6], 1
    %607 = vsyncpa [#allocation9], 1
    %608 = vsyncpa [#allocation4], 1

</llo_original>
